<compile_context>
chip_gen: v6e
topology: v6e:2x2x1
jax: 0.10.0
libtpu: 0.0.40
codegen_flags: <defaults>
</compile_context>

<pallas_src>
import math

import numpy as np
import jax
import jax.numpy as jnp
from jax import lax
from jax.experimental import pallas as pl
from jax.experimental.pallas import tpu as pltpu

_ROW_ALIGN = 16            # sublane alignment safe for both bf16 inputs and f32 outputs
_PI_F32 = np.float32(np.pi)
_TWO_OVER_PI = np.float32(2.0 / np.pi)


def _round_up(x, m):
    return -(-x // m) * m


def _cody_waite_pi_over_2():
    """pi/2 = C1 + C2 + C3 with C1, C2 limited to 11 significand bits, so n*C1 and
    n*C2 are exact f32 products for |n| < 2^13 (phase arguments up to ~1.3e4)."""
    pio2 = float(np.float64(np.pi) / 2.0)

    def chop(v, bits):
        m, e = np.frexp(np.float64(v))
        scale = float(np.ldexp(1.0, int(e) - bits))
        return float(np.floor(float(v) / scale) * scale)

    c1 = chop(pio2, 11)
    c2 = chop(pio2 - c1, 11)
    c3 = pio2 - c1 - c2
    return np.float32(c1), np.float32(c2), np.float32(c3)


_C1, _C2, _C3 = _cody_waite_pi_over_2()


def _fit_quarter_wave_polys():
    """Near-minimax coefficients (least squares at Chebyshev nodes, f64) for
        sin(r) ~= r * (S0 + S1*z + S2*z^2 + S3*z^3),  z = r^2
        cos(r) ~=      D0 + D1*z + D2*z^2 + D3*z^3
    on |r| <= pi/4 (+ slack for range-reduction rounding).  Max error ~1e-8 / ~1e-7,
    two VALU ops cheaper per output vreg than the previous deg-9/deg-8 Taylor forms."""
    zmax = (np.pi / 4.0 * 1.002) ** 2
    t = np.cos((2.0 * np.arange(512) + 1.0) * np.pi / 1024.0)     # Chebyshev nodes
    z = (t + 1.0) * 0.5 * zmax
    x = np.sqrt(z)
    V = np.stack([np.ones_like(z), z, z * z, z ** 3], axis=1)
    s, *_ = np.linalg.lstsq(V, np.sin(x) / x, rcond=None)
    c, *_ = np.linalg.lstsq(V, np.cos(x), rcond=None)
    return tuple(np.float32(v) for v in s), tuple(np.float32(v) for v in c)


_SIN_C, _COS_C = _fit_quarter_wave_polys()


def _make_kernel(k, num_freqs, fold):
    kF = k * num_freqs
    two_kF = 2 * kF
    W = fold * two_kF
    S0, S1, S2, S3 = _SIN_C
    D0, D1, D2, D3 = _COS_C

    def kernel(sel_ref, coords_ref, out_ref):
        # coords_ref: (tB, 3*fold*k) bf16  [hi | mid | lo] exact split of fl(coords*pi)
        # sel_ref   : (3*fold*k, W)  bf16  constant {0, 2^f} expansion matrix
        # out_ref   : (tB, W)              lane-dense folded [sin|cos] tile
        #
        # MXU gather + scale in a single default-precision bf16 pass:
        #   arg[row, col] = (hi + mid + lo)[row, src(col)] * 2^(f(col))
        # bf16 x power-of-two products are exact and the chunks are non-overlapping,
        # so arg matches the f32 reference phase to ~1 ulp.
        arg = lax.dot_general(
            coords_ref[...], sel_ref[...],
            dimension_numbers=(((1,), (0,)), ((), ())),
            preferred_element_type=jnp.float32)

        # Per-column quadrant offset: +1 on the cos half of each 2kF sub-row block
        # (cos(x) == sin(x + pi/2), applied exactly in the integer quadrant index).
        col = lax.broadcasted_iota(jnp.int32, (1, W), 1)
        quarter = ((col % two_kF) >= kF).astype(jnp.int32)

        # Cody-Waite range reduction (exact for |arg| < ~1.3e4).
        n_f = jnp.floor(arg * _TWO_OVER_PI + 0.5)
        q = n_f.astype(jnp.int32) + quarter
        r = arg - n_f * _C1
        r = r - n_f * _C2
        r = r - n_f * _C3

        z = r * r
        sin_r = r * (S0 + z * (S1 + z * (S2 + z * S3)))
        cos_r = D0 + z * (D1 + z * (D2 + z * D3))

        core = jnp.where((q & 1) == 1, cos_r, sin_r)
        sign = (q & 2) << 30                          # quadrants 2/3 -> flip sign bit
        res = pltpu.bitcast(pltpu.bitcast(core, jnp.int32) ^ sign, jnp.float32)
        out_ref[...] = res.astype(out_ref.dtype)

    return kernel


def positional_embedding(coords, num_freqs, *, target_lane_width=512,
                         target_block_bytes=2 << 20):
    """coords: (N, k) float array -> (N, 2*k*num_freqs), matching the PyTorch forward
    (sin block first, cos block second, coordinate-major / frequency-minor inside)."""
    N, k = coords.shape
    F = int(num_freqs)
    kF = k * F
    w_row = 2 * kF                                   # embedding width per coordinate row

    # ---- fold factor: pack `fold` coordinate rows per kernel row so the output tile is
    #      lane-dense (multiple of 128 lanes, ideally >= target_lane_width). ----
    fold = 128 // math.gcd(w_row, 128)
    if fold * w_row < target_lane_width:
        fold *= -(-target_lane_width // (fold * w_row))
    W = fold * w_row

    # ---- constant expansion matrix, stacked 3x so the [hi|mid|lo] bf16 split of
    #      fl(coords*pi) contracts to coords[d] * 2^f * pi in one bf16 MXU pass. ----
    cols = np.arange(W)
    p = cols // w_row                                # folded sub-row
    pos = cols % w_row                               # position inside [sin(kF) | cos(kF)]
    d = (pos % kF) // F                              # coordinate dimension
    f = pos % F                                      # frequency index
    sel = np.zeros((fold * k, W), dtype=np.float32)
    sel[p * k + d, cols] = (2.0 ** f).astype(np.float32)    # powers of two: exact in bf16
    sel3 = np.concatenate([sel, sel, sel], axis=0)          # rows: hi | mid | lo chunks
    K = 3 * fold * k

    # ---- tiling: ~2 MiB output tiles; pick the grid first, then the row tile, so the
    #      row padding stays <= grid*_ROW_ALIGN; keep the grid even so both v7x
    #      TensorCores get equal work when there is enough of it. ----
    folded_rows = -(-N // fold)
    block_rows = max(_ROW_ALIGN,
                     (target_block_bytes // (W * 4)) // _ROW_ALIGN * _ROW_ALIGN)
    grid = max(1, -(-folded_rows // block_rows))
    if grid == 1 and folded_rows > _ROW_ALIGN:
        grid = 2
    if grid > 1 and grid % 2:
        grid += 1
    tB = _round_up(-(-folded_rows // grid), _ROW_ALIGN)
    padded_rows = grid * tB

    # ---- fl(coords * pi) and its exact 3-way bf16 split (hi/mid/lo), folded.  The
    #      split runs on the tiny (N, k) input, not the 2*k*F-wide output. ----
    c_pi = coords.astype(jnp.float32) * _PI_F32                  # exact fl(c * pi)
    n_pad = padded_rows * fold
    if n_pad != N:
        c_pi = jnp.pad(c_pi, ((0, n_pad - N), (0, 0)))
    c_pi = c_pi.reshape(padded_rows, fold * k)                   # free row-major reshape
    hi = c_pi.astype(jnp.bfloat16)
    r1 = c_pi - hi.astype(jnp.float32)
    mid = r1.astype(jnp.bfloat16)
    lo = (r1 - mid.astype(jnp.float32)).astype(jnp.bfloat16)
    coords_split = jnp.concatenate([hi, mid, lo], axis=1)        # (padded_rows, K) bf16

    cost = pl.CostEstimate(
        flops=2 * padded_rows * W * K + 32 * padded_rows * W,
        transcendentals=0,
        bytes_accessed=padded_rows * W * 4 + padded_rows * K * 2 + K * W * 2)

    out_folded = pl.pallas_call(
        _make_kernel(k, F, fold),
        out_shape=jax.ShapeDtypeStruct((padded_rows, W), coords.dtype),
        grid_spec=pltpu.PrefetchScalarGridSpec(
            num_scalar_prefetch=0,
            grid=(grid,),
            in_specs=[
                pl.BlockSpec((K, W), lambda i: (0, 0)),          # resident, DMA'd once
                pl.BlockSpec((tB, K), lambda i: (i, 0)),         # coordinate row tile
            ],
            out_specs=pl.BlockSpec((tB, W), lambda i: (i, 0)),   # lane-dense, unmasked
        ),
        compiler_params=pltpu.CompilerParams(
            dimension_semantics=("parallel",),
        ),
        cost_estimate=cost,
    )(jnp.asarray(sel3, dtype=jnp.bfloat16), coords_split)

    out = out_folded.reshape(padded_rows * fold, w_row)          # free row-major reshape
    return out if n_pad == N else out[:N]


if __name__ == "__main__":
    key = jax.random.PRNGKey(0)
    N, k, num_freqs = 16, 4, 8
    coords = jax.random.normal(key, (N, k), dtype=jnp.float32)

    out = jax.block_until_ready(positional_embedding(coords, num_freqs))

    # Reference mirroring the PyTorch forward in f32.
    freq = np.float32((2.0 ** np.arange(num_freqs)) * np.pi)     # == 2^f * float32(pi)
    c_np = np.asarray(coords, dtype=np.float32)
    emb = (c_np[:, :, None] * freq[None, None, :]).reshape(N, k * num_freqs)
    ref = np.concatenate([np.sin(emb), np.cos(emb)], axis=-1)

    assert out.shape == (N, 2 * k * num_freqs)
    # atol covers ~1 ulp of the phase argument at the highest frequency band
    # (|arg| ~ 2^(F-1)*pi*|coord|), the intrinsic f32 sensitivity of sin/cos there.
    np.testing.assert_allclose(np.asarray(out), ref, rtol=1e-5, atol=2e-4)
    print("KERNEL_OK")
</pallas_src>

<mosaic_0001>
module attributes {stable_mosaic.version = 11 : i64} {
  func.func @kernel(%arg0: i32, %arg1: memref<96x512xbf16, #tpu.memory_space<vmem>>, %arg2: memref<16x96xbf16, #tpu.memory_space<vmem>>, %arg3: memref<16x512xf32, #tpu.memory_space<vmem>>) attributes {dimension_semantics = [#tpu.dimension_semantics<parallel>], iteration_bounds = array<i64: 1>, scalar_prefetch = 0 : i64, scratch_operands = 0 : i64, tpu.core_type = #tpu.core_type<tc>, window_params = [{pipeline_mode = #tpu.pipeline_mode<synchronous>, transform_indices = @transform_0, window_bounds = array<i64: 96, 512>}, {transform_indices = @transform_1, window_bounds = array<i64: 16, 96>}, {transform_indices = @transform_2, window_bounds = array<i64: 16, 512>}]} {
    %c0 = arith.constant 0 : index
    %c0_0 = arith.constant 0 : index
    %0 = vector.load %arg2[%c0, %c0_0] : memref<16x96xbf16, #tpu.memory_space<vmem>>, vector<16x96xbf16>
    %c0_1 = arith.constant 0 : index
    %c0_2 = arith.constant 0 : index
    %1 = vector.load %arg1[%c0_1, %c0_2] : memref<96x512xbf16, #tpu.memory_space<vmem>>, vector<96x512xbf16>
    %cst = arith.constant dense<0.000000e+00> : vector<16x512xf32>
    %2 = tpu.matmul %0, %1, %cst {dimension_numbers = #tpu.dot_dimension_numbers<[1], [0], [0], [1], [0, 0, 1, 1], [], []>} : vector<16x96xbf16>, vector<96x512xbf16>, vector<16x512xf32> -> vector<16x512xf32>
    %3 = tpu.iota {dimensions = array<i32: 1>} : vector<1x512xi32>
    %c64_i32 = arith.constant 64 : i32
    %c0_i32 = arith.constant 0 : i32
    %4 = arith.cmpi eq, %c64_i32, %c0_i32 : i32
    %c1_i32 = arith.constant 1 : i32
    %5 = arith.select %4, %c1_i32, %c64_i32 : i32
    %6 = vector.broadcast %5 : i32 to vector<1x512xi32>
    %7 = arith.remsi %3, %6 : vector<1x512xi32>
    %c0_i32_3 = arith.constant 0 : i32
    %8 = vector.broadcast %c0_i32_3 : i32 to vector<1x512xi32>
    %9 = arith.cmpi ne, %7, %8 : vector<1x512xi32>
    %c0_i32_4 = arith.constant 0 : i32
    %10 = vector.broadcast %c0_i32_4 : i32 to vector<1x512xi32>
    %11 = arith.cmpi slt, %7, %10 : vector<1x512xi32>
    %c0_i32_5 = arith.constant 0 : i32
    %12 = arith.cmpi slt, %5, %c0_i32_5 : i32
    %13 = vector.broadcast %12 : i1 to vector<1x512xi1>
    %14 = vector.broadcast %13 : vector<1x512xi1> to vector<1x512xi1>
    %15 = arith.xori %11, %14 : vector<1x512xi1>
    %16 = arith.andi %15, %9 : vector<1x512xi1>
    %17 = vector.broadcast %5 : i32 to vector<1x512xi32>
    %18 = arith.addi %7, %17 : vector<1x512xi32>
    %19 = arith.select %16, %18, %7 : vector<1x512xi1>, vector<1x512xi32>
    %c32_i32 = arith.constant 32 : i32
    %20 = vector.broadcast %c32_i32 : i32 to vector<1x512xi32>
    %21 = arith.cmpi sge, %19, %20 : vector<1x512xi32>
    %22 = arith.extui %21 : vector<1x512xi1> to vector<1x512xi32>
    %cst_6 = arith.constant 0.636619746 : f32
    %23 = vector.broadcast %cst_6 : f32 to vector<16x512xf32>
    %24 = arith.mulf %2, %23 : vector<16x512xf32>
    %cst_7 = arith.constant 5.000000e-01 : f32
    %25 = vector.broadcast %cst_7 : f32 to vector<16x512xf32>
    %26 = arith.addf %24, %25 : vector<16x512xf32>
    %27 = math.floor %26 : vector<16x512xf32>
    %28 = arith.fptosi %27 : vector<16x512xf32> to vector<16x512xi32>
    %29 = vector.broadcast %22 : vector<1x512xi32> to vector<16x512xi32>
    %30 = arith.addi %28, %29 : vector<16x512xi32>
    %cst_8 = arith.constant 1.5703125 : f32
    %31 = vector.broadcast %cst_8 : f32 to vector<16x512xf32>
    %32 = arith.mulf %27, %31 : vector<16x512xf32>
    %33 = arith.subf %2, %32 : vector<16x512xf32>
    %cst_9 = arith.constant 4.83751297E-4 : f32
    %34 = vector.broadcast %cst_9 : f32 to vector<16x512xf32>
    %35 = arith.mulf %27, %34 : vector<16x512xf32>
    %36 = arith.subf %33, %35 : vector<16x512xf32>
    %cst_10 = arith.constant 7.549790e-08 : f32
    %37 = vector.broadcast %cst_10 : f32 to vector<16x512xf32>
    %38 = arith.mulf %27, %37 : vector<16x512xf32>
    %39 = arith.subf %36, %38 : vector<16x512xf32>
    %40 = arith.mulf %39, %39 : vector<16x512xf32>
    %cst_11 = arith.constant -1.95026238E-4 : f32
    %41 = vector.broadcast %cst_11 : f32 to vector<16x512xf32>
    %42 = arith.mulf %40, %41 : vector<16x512xf32>
    %cst_12 = arith.constant 0.00833202619 : f32
    %43 = vector.broadcast %cst_12 : f32 to vector<16x512xf32>
    %44 = arith.addf %43, %42 : vector<16x512xf32>
    %45 = arith.mulf %40, %44 : vector<16x512xf32>
    %cst_13 = arith.constant -0.166666508 : f32
    %46 = vector.broadcast %cst_13 : f32 to vector<16x512xf32>
    %47 = arith.addf %46, %45 : vector<16x512xf32>
    %48 = arith.mulf %40, %47 : vector<16x512xf32>
    %cst_14 = arith.constant 1.000000e+00 : f32
    %49 = vector.broadcast %cst_14 : f32 to vector<16x512xf32>
    %50 = arith.addf %49, %48 : vector<16x512xf32>
    %51 = arith.mulf %39, %50 : vector<16x512xf32>
    %cst_15 = arith.constant -0.00135846424 : f32
    %52 = vector.broadcast %cst_15 : f32 to vector<16x512xf32>
    %53 = arith.mulf %40, %52 : vector<16x512xf32>
    %cst_16 = arith.constant 0.0416549295 : f32
    %54 = vector.broadcast %cst_16 : f32 to vector<16x512xf32>
    %55 = arith.addf %54, %53 : vector<16x512xf32>
    %56 = arith.mulf %40, %55 : vector<16x512xf32>
    %cst_17 = arith.constant -0.49999854 : f32
    %57 = vector.broadcast %cst_17 : f32 to vector<16x512xf32>
    %58 = arith.addf %57, %56 : vector<16x512xf32>
    %59 = arith.mulf %40, %58 : vector<16x512xf32>
    %cst_18 = arith.constant 1.000000e+00 : f32
    %60 = vector.broadcast %cst_18 : f32 to vector<16x512xf32>
    %61 = arith.addf %60, %59 : vector<16x512xf32>
    %c1_i32_19 = arith.constant 1 : i32
    %62 = vector.broadcast %c1_i32_19 : i32 to vector<16x512xi32>
    %63 = arith.andi %30, %62 : vector<16x512xi32>
    %c1_i32_20 = arith.constant 1 : i32
    %64 = vector.broadcast %c1_i32_20 : i32 to vector<16x512xi32>
    %65 = arith.cmpi eq, %63, %64 : vector<16x512xi32>
    %66 = arith.select %65, %61, %51 : vector<16x512xi1>, vector<16x512xf32>
    %c2_i32 = arith.constant 2 : i32
    %67 = vector.broadcast %c2_i32 : i32 to vector<16x512xi32>
    %68 = arith.andi %30, %67 : vector<16x512xi32>
    %c30_i32 = arith.constant 30 : i32
    %69 = vector.broadcast %c30_i32 : i32 to vector<16x512xi32>
    %70 = arith.shli %68, %69 : vector<16x512xi32>
    %71 = tpu.bitcast %66 : vector<16x512xf32> -> vector<16x512xi32>
    %72 = arith.xori %71, %70 : vector<16x512xi32>
    %73 = tpu.bitcast %72 : vector<16x512xi32> -> vector<16x512xf32>
    %c0_21 = arith.constant 0 : index
    %c0_22 = arith.constant 0 : index
    %74 = vector.load %arg3[%c0_21, %c0_22] : memref<16x512xf32, #tpu.memory_space<vmem>>, vector<16x512xf32>
    tpu.vector_store %arg3[%c0_21, %c0_22], %73 {strides = array<i32>} : memref<16x512xf32, #tpu.memory_space<vmem>>, vector<16x512xf32>,
    return
  }
  func.func @transform_0(%arg0: i32) -> (i32, i32) {
    %c0_i32 = arith.constant 0 : i32
    %c0_i32_0 = arith.constant 0 : i32
    %c0_i32_1 = arith.constant 0 : i32
    return %c0_i32, %c0_i32_0 : i32, i32
  }
  func.func @transform_1(%arg0: i32) -> (i32, i32) {
    %c0_i32 = arith.constant 0 : i32
    %c0_i32_0 = arith.constant 0 : i32
    return %arg0, %c0_i32 : i32, i32
  }
  func.func @transform_2(%arg0: i32) -> (i32, i32) {
    %c0_i32 = arith.constant 0 : i32
    %c0_i32_0 = arith.constant 0 : i32
    return %arg0, %c0_i32 : i32, i32
  }
}

</mosaic_0001>

<llo_original>
// kernel: tpu_custom_call.1
$region0: #{tpu_custom_call.1}
  #allocation0 [shape = 'u32[]', space=smem, size = 0x4, offset = 0x4, fixed_abs, tag = 'smem constant byte address 0x4 - core index']
  #allocation1 [shape = 'u32[144,128]{1,0:T(1,128)}', space=vmem, size = 0x12000, scoped, tag = 'internal scratch']
  %s0 = inlined_call_operand.hbm [shape: bf16[96,512], index: 0, kind: input, shape index: {}]
  %s1 = inlined_call_operand.hbm [shape: bf16[16,96], index: 1, kind: input, shape index: {}]
  %s2 = inlined_call_operand.hbm [shape: f32[16,512], index: 2, kind: output, shape index: {}]
  %s3 = sld [smem:[#allocation0]]
  $region26: #{tpu_custom_call.1} parent=0
    _
  %s5 = ssub.s32 1, %s3
  %s6 = scalar_select 0, %s5, %s3
  $region1: #{tpu_custom_call.1} parent=0
    #allocation2 [shape = 'u8[98304]{0}', space=vmem, size = 0x18000, scoped, tag = 'input window, operand 0, single buffered']
    #allocation3 [shape = 's32[1]{0}', space=sflag, size = 0x4, scoped, tag = 'scoped memory for tpu_custom_call.1']
    #allocation4 [shape = 's32[1]{0}', space=sflag, size = 0x4, scoped, tag = 'scoped memory for tpu_custom_call.1']
    #allocation5 [shape = 'u8[4096]{0}', space=vmem, size = 0x1000, scoped, tag = 'input window, operand 1, single buffered']
    #allocation6 [shape = 's32[1]{0}', space=sflag, size = 0x4, scoped, tag = 'scoped memory for tpu_custom_call.1']
    #allocation7 [shape = 'u8[32768]{0}', space=vmem, size = 0x8000, scoped, tag = 'output window, operand 0, single buffered']
    %7 = vsyncpa [#allocation3], 0
    %8 = vsyncpa [#allocation6], 0
    %9 = vsyncpa [#allocation4], 0
    // Predicated region
    $region2: #{tpu_custom_call.1} parent=1 // pred_check
      _
    $region3: #{tpu_custom_call.1} parent=1 // pred_check_branch
      %11 = sbr.rel (0) target = $region5
    $region4: #{tpu_custom_call.1} parent=1 // pred_region
      %s13 = ssub.s32 3072, 3072
      %14 = vsyncadd [#allocation3], %s13
      %s15 = sshll.u32 [#allocation2], 4
      %s16 = int_to_ptr.vmem [resolvable:$true] %s15
      %21 = dma.hbm_to_vmem [thread:$0]  %s0, 3072, %s16, [#allocation3], 256, 256, 16
    $region5: #{tpu_custom_call.1} parent=1 // pred_fallthru
      _
    // Predicated region
    $region6: #{tpu_custom_call.1} parent=1 // pred_check
      _
    $region7: #{tpu_custom_call.1} parent=1 // pred_check_branch
      %23 = sbr.rel (0) target = $region9
    $region8: #{tpu_custom_call.1} parent=1 // pred_region
      %s25 = ssub.s32 128, 128
      %26 = vsyncadd [#allocation6], %s25
      %s27 = sshll.u32 [#allocation5], 4
      %s28 = int_to_ptr.vmem [resolvable:$true] %s27
      %33 = dma.hbm_to_vmem [thread:$0]  %s1, 128, %s28, [#allocation6], 64, 64, 4
    $region9: #{tpu_custom_call.1} parent=1 // pred_fallthru
      _
    // Predicated region
    $region10: #{tpu_custom_call.1} parent=1 // pred_check
      _
    $region11: #{tpu_custom_call.1} parent=1 // pred_check_branch
      %35 = sbr.rel (0) target = $region13
    $region12: #{tpu_custom_call.1} parent=1 // pred_region
      %36 = dma.done [#allocation3], 3072
    $region13: #{tpu_custom_call.1} parent=1 // pred_fallthru
      _
    // Predicated region
    $region14: #{tpu_custom_call.1} parent=1 // pred_check
      _
    $region15: #{tpu_custom_call.1} parent=1 // pred_check_branch
      %38 = sbr.rel (0) target = $region17
    $region16: #{tpu_custom_call.1} parent=1 // pred_region
      %39 = dma.done [#allocation6], 128
    $region17: #{tpu_custom_call.1} parent=1 // pred_fallthru
      _
    %v41 = vld [vmem:[#allocation5] sm:$0xf]
    %v42 = vld [vmem:[#allocation5 + $0x4] sm:$0xf]
    %v43 = vld [vmem:[#allocation2] sm:$0xff]
    %v44 = vld [vmem:[#allocation2 + $0x8] sm:$0xff]
    %v45 = vld [vmem:[#allocation2 + $0x10] sm:$0xff]
    %v46 = vld [vmem:[#allocation2 + $0x18] sm:$0xff]
    %v47 = vld [vmem:[#allocation2 + $0x20] sm:$0xff]
    %v48 = vld [vmem:[#allocation2 + $0x28] sm:$0xff]
    %v49 = vld [vmem:[#allocation2 + $0x30] sm:$0xff]
    %v50 = vld [vmem:[#allocation2 + $0x38] sm:$0xff]
    %v51 = vld [vmem:[#allocation2 + $0x40] sm:$0xff]
    %v52 = vld [vmem:[#allocation2 + $0x48] sm:$0xff]
    %v53 = vld [vmem:[#allocation2 + $0x50] sm:$0xff]
    %v54 = vld [vmem:[#allocation2 + $0x58] sm:$0xff]
    %v55 = vld [vmem:[#allocation2 + $0x60] sm:$0xff]
    %v56 = vld [vmem:[#allocation2 + $0x68] sm:$0xff]
    %v57 = vld [vmem:[#allocation2 + $0x70] sm:$0xff]
    %v58 = vld [vmem:[#allocation2 + $0x78] sm:$0xff]
    %v59 = vld [vmem:[#allocation2 + $0x80] sm:$0xff]
    %v60 = vld [vmem:[#allocation2 + $0x88] sm:$0xff]
    %v61 = vld [vmem:[#allocation2 + $0x90] sm:$0xff]
    %v62 = vld [vmem:[#allocation2 + $0x98] sm:$0xff]
    %v63 = vld [vmem:[#allocation2 + $0xa0] sm:$0xff]
    %v64 = vld [vmem:[#allocation2 + $0xa8] sm:$0xff]
    %v65 = vld [vmem:[#allocation2 + $0xb0] sm:$0xff]
    %v66 = vld [vmem:[#allocation2 + $0xb8] sm:$0xff]
    %v69 = vunpack.c.l.b16 %v41
    %v70 = vunpack.c.l.b16 %v42
    %v71 = vpack.c.b16 %v70, %v69
    %v96 = vunpack.c.l.b16 %v43
    %v97 = vunpack.c.h.b16 %v43
    %v98 = vunpack.c.l.b16 %v44
    %v99 = vunpack.c.h.b16 %v44
    %v100 = vunpack.c.l.b16 %v45
    %v101 = vunpack.c.h.b16 %v45
    %v102 = vunpack.c.l.b16 %v46
    %v103 = vunpack.c.h.b16 %v46
    %v104 = vunpack.c.l.b16 %v47
    %v105 = vunpack.c.h.b16 %v47
    %v106 = vunpack.c.l.b16 %v48
    %v107 = vunpack.c.h.b16 %v48
    %v108 = vunpack.c.l.b16 %v49
    %v109 = vunpack.c.h.b16 %v49
    %v110 = vunpack.c.l.b16 %v50
    %v111 = vunpack.c.h.b16 %v50
    %v112 = vunpack.c.l.b16 %v51
    %v113 = vunpack.c.h.b16 %v51
    %v114 = vunpack.c.l.b16 %v52
    %v115 = vunpack.c.h.b16 %v52
    %v116 = vunpack.c.l.b16 %v53
    %v117 = vunpack.c.h.b16 %v53
    %v118 = vunpack.c.l.b16 %v54
    %v119 = vunpack.c.h.b16 %v54
    %v120 = vunpack.c.l.b16 %v55
    %v121 = vunpack.c.h.b16 %v55
    %v122 = vunpack.c.l.b16 %v56
    %v123 = vunpack.c.h.b16 %v56
    %v124 = vunpack.c.l.b16 %v57
    %v125 = vunpack.c.h.b16 %v57
    %v126 = vunpack.c.l.b16 %v58
    %v127 = vunpack.c.h.b16 %v58
    %v128 = vunpack.c.l.b16 %v59
    %v129 = vunpack.c.h.b16 %v59
    %v130 = vunpack.c.l.b16 %v60
    %v131 = vunpack.c.h.b16 %v60
    %v132 = vunpack.c.l.b16 %v61
    %v133 = vunpack.c.h.b16 %v61
    %v134 = vunpack.c.l.b16 %v62
    %v135 = vunpack.c.h.b16 %v62
    %v136 = vunpack.c.l.b16 %v63
    %v137 = vunpack.c.h.b16 %v63
    %v138 = vunpack.c.l.b16 %v64
    %v139 = vunpack.c.h.b16 %v64
    %v140 = vunpack.c.l.b16 %v65
    %v141 = vunpack.c.h.b16 %v65
    %v142 = vunpack.c.l.b16 %v66
    %v143 = vunpack.c.h.b16 %v66
    %v144 = vpack.c.b16 %v100, %v96
    %v145 = vpack.c.b16 %v101, %v97
    %v146 = vpack.c.b16 %v102, %v98
    %v147 = vpack.c.b16 %v103, %v99
    %v148 = vpack.c.b16 %v108, %v104
    %v149 = vpack.c.b16 %v109, %v105
    %v150 = vpack.c.b16 %v110, %v106
    %v151 = vpack.c.b16 %v111, %v107
    %v152 = vpack.c.b16 %v116, %v112
    %v153 = vpack.c.b16 %v117, %v113
    %v154 = vpack.c.b16 %v118, %v114
    %v155 = vpack.c.b16 %v119, %v115
    %v156 = vpack.c.b16 %v124, %v120
    %v157 = vpack.c.b16 %v125, %v121
    %v158 = vpack.c.b16 %v126, %v122
    %v159 = vpack.c.b16 %v127, %v123
    %v160 = vpack.c.b16 %v132, %v128
    %v161 = vpack.c.b16 %v133, %v129
    %v162 = vpack.c.b16 %v134, %v130
    %v163 = vpack.c.b16 %v135, %v131
    %v164 = vpack.c.b16 %v140, %v136
    %v165 = vpack.c.b16 %v141, %v137
    %v166 = vpack.c.b16 %v142, %v138
    %v167 = vpack.c.b16 %v143, %v139
    %vm192 = vcmask 785408
    %v194 = vsel %vm192, %v71, 0
    %196 = vmatprep.subr.bf16.mxu0 0
    %197 = vmatpush1.bf16.msra.mxu0 0
    %198 = vmatprep.subr.bf16.mxu0 0
    %199 = vmatpush1.bf16.msra.mxu0 0
    %200 = vmatprep.subr.bf16.mxu0 %v165
    %201 = vmatpush1.bf16.msra.mxu0 %v164
    %202 = vmatprep.subr.bf16.mxu0 %v161
    %203 = vmatpush1.bf16.msra.mxu0 %v160
    %204 = vmatprep.subr.bf16.mxu0 %v157
    %205 = vmatpush1.bf16.msra.mxu0 %v156
    %206 = vmatprep.subr.bf16.mxu0 %v153
    %207 = vmatpush1.bf16.msra.mxu0 %v152
    %208 = vmatprep.subr.bf16.mxu0 %v149
    %209 = vmatpush1.bf16.msra.mxu0 %v148
    %210 = vmatprep.subr.bf16.mxu0 %v145
    %211 = vmatpush1.bf16.msra.mxu0 %v144
    %212 = vmatprep.subr.bf16.mxu0 0
    %213 = vmatpush2.bf16.msra.mxu0 0
    %214 = vmatprep.subr.bf16.mxu0 0
    %215 = vmatpush2.bf16.msra.mxu0 0
    %216 = vmatprep.subr.bf16.mxu0 0
    %217 = vmatpush2.bf16.msra.mxu0 0
    %218 = vmatprep.subr.bf16.mxu0 0
    %219 = vmatpush2.bf16.msra.mxu0 0
    %220 = vmatprep.subr.bf16.mxu0 0
    %221 = vmatpush2.bf16.msra.mxu0 0
    %222 = vmatprep.subr.bf16.mxu0 0
    %223 = vmatpush2.bf16.msra.mxu0 0
    %224 = vmatprep.subr.bf16.mxu0 0
    %225 = vmatpush2.bf16.msra.mxu0 0
    %226 = vmatprep.subr.bf16.mxu0 0
    %227 = vmatpush2.bf16.msra.mxu0 0
    %228 = vmatprep.mubr.bf16.mxu0 0
    %229 = vmatmul.mubr.bf16.gmra.mxu0 %v194
    %v230 = vpop.f32.mrf.mxu0
    %v231 = vadd.f32 0.0, %v230
    %v232 = vpop.f32.mrf.mxu0
    %v233 = vadd.f32 0.0, %v232
    %v234 = vpop.f32.mrf.mxu0
    %v235 = vadd.f32 0.0, %v234
    %v236 = vpop.f32.mrf.mxu0
    %v237 = vadd.f32 0.0, %v236
    %238 = vdwg.mxu0
    %239 = vmatprep.subr.bf16.mxu0 0
    %240 = vmatpush1.bf16.msra.mxu0 0
    %241 = vmatprep.subr.bf16.mxu0 0
    %242 = vmatpush1.bf16.msra.mxu0 0
    %243 = vmatprep.subr.bf16.mxu0 %v167
    %244 = vmatpush1.bf16.msra.mxu0 %v166
    %245 = vmatprep.subr.bf16.mxu0 %v163
    %246 = vmatpush1.bf16.msra.mxu0 %v162
    %247 = vmatprep.subr.bf16.mxu0 %v159
    %248 = vmatpush1.bf16.msra.mxu0 %v158
    %249 = vmatprep.subr.bf16.mxu0 %v155
    %250 = vmatpush1.bf16.msra.mxu0 %v154
    %251 = vmatprep.subr.bf16.mxu0 %v151
    %252 = vmatpush1.bf16.msra.mxu0 %v150
    %253 = vmatprep.subr.bf16.mxu0 %v147
    %254 = vmatpush1.bf16.msra.mxu0 %v146
    %255 = vmatprep.subr.bf16.mxu0 0
    %256 = vmatpush2.bf16.msra.mxu0 0
    %257 = vmatprep.subr.bf16.mxu0 0
    %258 = vmatpush2.bf16.msra.mxu0 0
    %259 = vmatprep.subr.bf16.mxu0 0
    %260 = vmatpush2.bf16.msra.mxu0 0
    %261 = vmatprep.subr.bf16.mxu0 0
    %262 = vmatpush2.bf16.msra.mxu0 0
    %263 = vmatprep.subr.bf16.mxu0 0
    %264 = vmatpush2.bf16.msra.mxu0 0
    %265 = vmatprep.subr.bf16.mxu0 0
    %266 = vmatpush2.bf16.msra.mxu0 0
    %267 = vmatprep.subr.bf16.mxu0 0
    %268 = vmatpush2.bf16.msra.mxu0 0
    %269 = vmatprep.subr.bf16.mxu0 0
    %270 = vmatpush2.bf16.msra.mxu0 0
    %271 = vmatprep.mubr.bf16.mxu0 0
    %272 = vmatmul.mubr.bf16.gmra.mxu0 %v194
    %v273 = vpop.f32.mrf.mxu0
    %v274 = vadd.f32 0.0, %v273
    %v275 = vpop.f32.mrf.mxu0
    %v276 = vadd.f32 0.0, %v275
    %v277 = vpop.f32.mrf.mxu0
    %v278 = vadd.f32 0.0, %v277
    %v279 = vpop.f32.mrf.mxu0
    %v280 = vadd.f32 0.0, %v279
    %281 = vdwg.mxu0
    %v282 = vlaneseq
    %v283 = vand.u32 %v282, 127
    %v284 = vadd.s32 %v283, 128
    %v285 = vadd.s32 %v283, 256
    %v286 = vadd.s32 %v283, 384
    %vm287 = vcmp.lt.s32.totalorder %v283, 0
    %v288 = vsub.s32 0, %v283
    %v289 = vsel %vm287, %v288, %v283
    %v290 = vshrl.u32 %v289, 6
    %v291 = vand.u32 %v289, 63
    %v292 = vsub.s32 0, %v291
    %v293 = vsel %vm287, %v292, %v291
    %vm294 = vcmp.lt.s32.totalorder %v284, 0
    %v295 = vsub.s32 0, %v284
    %v296 = vsel %vm294, %v295, %v284
    %v297 = vshrl.u32 %v296, 6
    %v298 = vand.u32 %v296, 63
    %v299 = vsub.s32 0, %v298
    %v300 = vsel %vm294, %v299, %v298
    %vm301 = vcmp.lt.s32.totalorder %v285, 0
    %v302 = vsub.s32 0, %v285
    %v303 = vsel %vm301, %v302, %v285
    %v304 = vshrl.u32 %v303, 6
    %v305 = vand.u32 %v303, 63
    %v306 = vsub.s32 0, %v305
    %v307 = vsel %vm301, %v306, %v305
    %vm308 = vcmp.lt.s32.totalorder %v286, 0
    %v309 = vsub.s32 0, %v286
    %v310 = vsel %vm308, %v309, %v286
    %v311 = vshrl.u32 %v310, 6
    %v312 = vand.u32 %v310, 63
    %v313 = vsub.s32 0, %v312
    %v314 = vsel %vm308, %v313, %v312
    %vm315 = vcmp.ne.s32.totalorder %v293, 0
    %vm316 = vcmp.ne.s32.totalorder %v300, 0
    %vm317 = vcmp.ne.s32.totalorder %v307, 0
    %vm318 = vcmp.ne.s32.totalorder %v314, 0
    %vm319 = vcmp.lt.s32.totalorder %v293, 0
    %vm320 = vcmp.lt.s32.totalorder %v300, 0
    %vm321 = vcmp.lt.s32.totalorder %v307, 0
    %vm322 = vcmp.lt.s32.totalorder %v314, 0
    %vm323 = vmand %vm319, %vm315
    %vm324 = vmand %vm320, %vm316
    %vm325 = vmand %vm321, %vm317
    %vm326 = vmand %vm322, %vm318
    %v327 = vadd.s32 %v293, 64
    %v328 = vadd.s32 %v300, 64
    %v329 = vadd.s32 %v307, 64
    %v330 = vadd.s32 %v314, 64
    %v331 = vsel %vm323, %v327, %v293
    %v332 = vsel %vm324, %v328, %v300
    %v333 = vsel %vm325, %v329, %v307
    %v334 = vsel %vm326, %v330, %v314
    %vm335 = vcmp.ge.s32.totalorder %v331, 32
    %vm336 = vcmp.ge.s32.totalorder %v332, 32
    %vm337 = vcmp.ge.s32.totalorder %v333, 32
    %vm338 = vcmp.ge.s32.totalorder %v334, 32
    %v339 = vsel %vm335, 1, 0
    %v340 = vsel %vm336, 1, 0
    %v341 = vsel %vm337, 1, 0
    %v342 = vsel %vm338, 1, 0
    %v343 = vmul.f32 %v231, 0.63661975
    %v344 = vmul.f32 %v233, 0.63661975
    %v345 = vmul.f32 %v274, 0.63661975
    %v346 = vmul.f32 %v276, 0.63661975
    %v347 = vmul.f32 %v235, 0.63661975
    %v348 = vmul.f32 %v237, 0.63661975
    %v349 = vmul.f32 %v278, 0.63661975
    %v350 = vmul.f32 %v280, 0.63661975
    %v351 = vadd.f32 %v343, 0.5
    %v352 = vadd.f32 %v344, 0.5
    %v353 = vadd.f32 %v345, 0.5
    %v354 = vadd.f32 %v346, 0.5
    %v355 = vadd.f32 %v347, 0.5
    %v356 = vadd.f32 %v348, 0.5
    %v357 = vadd.f32 %v349, 0.5
    %v358 = vadd.f32 %v350, 0.5
    %v359 = vfloor.f32 %v351
    %v360 = vfloor.f32 %v352
    %v361 = vfloor.f32 %v353
    %v362 = vfloor.f32 %v354
    %v363 = vfloor.f32 %v355
    %v364 = vfloor.f32 %v356
    %v365 = vfloor.f32 %v357
    %v366 = vfloor.f32 %v358
    %v367 = vcvt.f32.s32.to.zero.pseudo %v359
    %v368 = vcvt.f32.s32.to.zero.pseudo %v360
    %v369 = vcvt.f32.s32.to.zero.pseudo %v361
    %v370 = vcvt.f32.s32.to.zero.pseudo %v362
    %v371 = vcvt.f32.s32.to.zero.pseudo %v363
    %v372 = vcvt.f32.s32.to.zero.pseudo %v364
    %v373 = vcvt.f32.s32.to.zero.pseudo %v365
    %v374 = vcvt.f32.s32.to.zero.pseudo %v366
    %v375 = vadd.s32 %v367, %v339
    %v376 = vadd.s32 %v368, %v340
    %v377 = vadd.s32 %v369, %v341
    %v378 = vadd.s32 %v370, %v342
    %v379 = vadd.s32 %v371, %v339
    %v380 = vadd.s32 %v372, %v340
    %v381 = vadd.s32 %v373, %v341
    %v382 = vadd.s32 %v374, %v342
    %v383 = vmul.f32 %v359, 1.5703125
    %v384 = vmul.f32 %v360, 1.5703125
    %v385 = vmul.f32 %v361, 1.5703125
    %v386 = vmul.f32 %v362, 1.5703125
    %v387 = vmul.f32 %v363, 1.5703125
    %v388 = vmul.f32 %v364, 1.5703125
    %v389 = vmul.f32 %v365, 1.5703125
    %v390 = vmul.f32 %v366, 1.5703125
    %v391 = vsub.f32 %v231, %v383
    %v392 = vsub.f32 %v233, %v384
    %v393 = vsub.f32 %v274, %v385
    %v394 = vsub.f32 %v276, %v386
    %v395 = vsub.f32 %v235, %v387
    %v396 = vsub.f32 %v237, %v388
    %v397 = vsub.f32 %v278, %v389
    %v398 = vsub.f32 %v280, %v390
    %v399 = vmul.f32 %v359, 0.0004837513
    %v400 = vmul.f32 %v360, 0.0004837513
    %v401 = vmul.f32 %v361, 0.0004837513
    %v402 = vmul.f32 %v362, 0.0004837513
    %v403 = vmul.f32 %v363, 0.0004837513
    %v404 = vmul.f32 %v364, 0.0004837513
    %v405 = vmul.f32 %v365, 0.0004837513
    %v406 = vmul.f32 %v366, 0.0004837513
    %v407 = vsub.f32 %v391, %v399
    %v408 = vsub.f32 %v392, %v400
    %v409 = vsub.f32 %v393, %v401
    %v410 = vsub.f32 %v394, %v402
    %v411 = vsub.f32 %v395, %v403
    %v412 = vsub.f32 %v396, %v404
    %v413 = vsub.f32 %v397, %v405
    %v414 = vsub.f32 %v398, %v406
    %v415 = vmul.f32 %v359, 7.54979e-08
    %v416 = vmul.f32 %v360, 7.54979e-08
    %v417 = vmul.f32 %v361, 7.54979e-08
    %v418 = vmul.f32 %v362, 7.54979e-08
    %v419 = vmul.f32 %v363, 7.54979e-08
    %v420 = vmul.f32 %v364, 7.54979e-08
    %v421 = vmul.f32 %v365, 7.54979e-08
    %v422 = vmul.f32 %v366, 7.54979e-08
    %v423 = vsub.f32 %v407, %v415
    %v424 = vsub.f32 %v408, %v416
    %v425 = vsub.f32 %v409, %v417
    %v426 = vsub.f32 %v410, %v418
    %v427 = vsub.f32 %v411, %v419
    %v428 = vsub.f32 %v412, %v420
    %v429 = vsub.f32 %v413, %v421
    %v430 = vsub.f32 %v414, %v422
    %v431 = vmul.f32 %v423, %v423
    %v432 = vmul.f32 %v424, %v424
    %v433 = vmul.f32 %v425, %v425
    %v434 = vmul.f32 %v426, %v426
    %v435 = vmul.f32 %v427, %v427
    %v436 = vmul.f32 %v428, %v428
    %v437 = vmul.f32 %v429, %v429
    %v438 = vmul.f32 %v430, %v430
    %v439 = vmul.f32 %v431, -0.00019502624
    %v440 = vmul.f32 %v432, -0.00019502624
    %v441 = vmul.f32 %v433, -0.00019502624
    %v442 = vmul.f32 %v434, -0.00019502624
    %v443 = vmul.f32 %v435, -0.00019502624
    %v444 = vmul.f32 %v436, -0.00019502624
    %v445 = vmul.f32 %v437, -0.00019502624
    %v446 = vmul.f32 %v438, -0.00019502624
    %v447 = vadd.f32 %v439, 0.008332026
    %v448 = vadd.f32 %v440, 0.008332026
    %v449 = vadd.f32 %v441, 0.008332026
    %v450 = vadd.f32 %v442, 0.008332026
    %v451 = vadd.f32 %v443, 0.008332026
    %v452 = vadd.f32 %v444, 0.008332026
    %v453 = vadd.f32 %v445, 0.008332026
    %v454 = vadd.f32 %v446, 0.008332026
    %v455 = vmul.f32 %v431, %v447
    %v456 = vmul.f32 %v432, %v448
    %v457 = vmul.f32 %v433, %v449
    %v458 = vmul.f32 %v434, %v450
    %v459 = vmul.f32 %v435, %v451
    %v460 = vmul.f32 %v436, %v452
    %v461 = vmul.f32 %v437, %v453
    %v462 = vmul.f32 %v438, %v454
    %v463 = vadd.f32 %v455, -0.16666651
    %v464 = vadd.f32 %v456, -0.16666651
    %v465 = vadd.f32 %v457, -0.16666651
    %v466 = vadd.f32 %v458, -0.16666651
    %v467 = vadd.f32 %v459, -0.16666651
    %v468 = vadd.f32 %v460, -0.16666651
    %v469 = vadd.f32 %v461, -0.16666651
    %v470 = vadd.f32 %v462, -0.16666651
    %v471 = vmul.f32 %v431, %v463
    %v472 = vmul.f32 %v432, %v464
    %v473 = vmul.f32 %v433, %v465
    %v474 = vmul.f32 %v434, %v466
    %v475 = vmul.f32 %v435, %v467
    %v476 = vmul.f32 %v436, %v468
    %v477 = vmul.f32 %v437, %v469
    %v478 = vmul.f32 %v438, %v470
    %v479 = vadd.f32 %v471, 1.0
    %v480 = vadd.f32 %v472, 1.0
    %v481 = vadd.f32 %v473, 1.0
    %v482 = vadd.f32 %v474, 1.0
    %v483 = vadd.f32 %v475, 1.0
    %v484 = vadd.f32 %v476, 1.0
    %v485 = vadd.f32 %v477, 1.0
    %v486 = vadd.f32 %v478, 1.0
    %v487 = vmul.f32 %v423, %v479
    %v488 = vmul.f32 %v424, %v480
    %v489 = vmul.f32 %v425, %v481
    %v490 = vmul.f32 %v426, %v482
    %v491 = vmul.f32 %v427, %v483
    %v492 = vmul.f32 %v428, %v484
    %v493 = vmul.f32 %v429, %v485
    %v494 = vmul.f32 %v430, %v486
    %v495 = vmul.f32 %v431, -0.0013584642
    %v496 = vmul.f32 %v432, -0.0013584642
    %v497 = vmul.f32 %v433, -0.0013584642
    %v498 = vmul.f32 %v434, -0.0013584642
    %v499 = vmul.f32 %v435, -0.0013584642
    %v500 = vmul.f32 %v436, -0.0013584642
    %v501 = vmul.f32 %v437, -0.0013584642
    %v502 = vmul.f32 %v438, -0.0013584642
    %v503 = vadd.f32 %v495, 0.04165493
    %v504 = vadd.f32 %v496, 0.04165493
    %v505 = vadd.f32 %v497, 0.04165493
    %v506 = vadd.f32 %v498, 0.04165493
    %v507 = vadd.f32 %v499, 0.04165493
    %v508 = vadd.f32 %v500, 0.04165493
    %v509 = vadd.f32 %v501, 0.04165493
    %v510 = vadd.f32 %v502, 0.04165493
    %v511 = vmul.f32 %v431, %v503
    %v512 = vmul.f32 %v432, %v504
    %v513 = vmul.f32 %v433, %v505
    %v514 = vmul.f32 %v434, %v506
    %v515 = vmul.f32 %v435, %v507
    %v516 = vmul.f32 %v436, %v508
    %v517 = vmul.f32 %v437, %v509
    %v518 = vmul.f32 %v438, %v510
    %v519 = vadd.f32 %v511, -0.49999854
    %v520 = vadd.f32 %v512, -0.49999854
    %v521 = vadd.f32 %v513, -0.49999854
    %v522 = vadd.f32 %v514, -0.49999854
    %v523 = vadd.f32 %v515, -0.49999854
    %v524 = vadd.f32 %v516, -0.49999854
    %v525 = vadd.f32 %v517, -0.49999854
    %v526 = vadd.f32 %v518, -0.49999854
    %v527 = vmul.f32 %v431, %v519
    %v528 = vmul.f32 %v432, %v520
    %v529 = vmul.f32 %v433, %v521
    %v530 = vmul.f32 %v434, %v522
    %v531 = vmul.f32 %v435, %v523
    %v532 = vmul.f32 %v436, %v524
    %v533 = vmul.f32 %v437, %v525
    %v534 = vmul.f32 %v438, %v526
    %v535 = vadd.f32 %v527, 1.0
    %v536 = vadd.f32 %v528, 1.0
    %v537 = vadd.f32 %v529, 1.0
    %v538 = vadd.f32 %v530, 1.0
    %v539 = vadd.f32 %v531, 1.0
    %v540 = vadd.f32 %v532, 1.0
    %v541 = vadd.f32 %v533, 1.0
    %v542 = vadd.f32 %v534, 1.0
    %v543 = vand.u32 %v375, 1
    %v544 = vand.u32 %v376, 1
    %v545 = vand.u32 %v377, 1
    %v546 = vand.u32 %v378, 1
    %v547 = vand.u32 %v379, 1
    %v548 = vand.u32 %v380, 1
    %v549 = vand.u32 %v381, 1
    %v550 = vand.u32 %v382, 1
    %vm551 = vcmp.eq.s32.totalorder %v543, 1
    %vm552 = vcmp.eq.s32.totalorder %v544, 1
    %vm553 = vcmp.eq.s32.totalorder %v545, 1
    %vm554 = vcmp.eq.s32.totalorder %v546, 1
    %vm555 = vcmp.eq.s32.totalorder %v547, 1
    %vm556 = vcmp.eq.s32.totalorder %v548, 1
    %vm557 = vcmp.eq.s32.totalorder %v549, 1
    %vm558 = vcmp.eq.s32.totalorder %v550, 1
    %v559 = vsel %vm551, %v535, %v487
    %v560 = vsel %vm552, %v536, %v488
    %v561 = vsel %vm553, %v537, %v489
    %v562 = vsel %vm554, %v538, %v490
    %v563 = vsel %vm555, %v539, %v491
    %v564 = vsel %vm556, %v540, %v492
    %v565 = vsel %vm557, %v541, %v493
    %v566 = vsel %vm558, %v542, %v494
    %v567 = vand.u32 %v375, 2
    %v568 = vand.u32 %v376, 2
    %v569 = vand.u32 %v377, 2
    %v570 = vand.u32 %v378, 2
    %v571 = vand.u32 %v379, 2
    %v572 = vand.u32 %v380, 2
    %v573 = vand.u32 %v381, 2
    %v574 = vand.u32 %v382, 2
    %v575 = vshll.u32 %v567, 30
    %v576 = vshll.u32 %v568, 30
    %v577 = vshll.u32 %v569, 30
    %v578 = vshll.u32 %v570, 30
    %v579 = vshll.u32 %v571, 30
    %v580 = vshll.u32 %v572, 30
    %v581 = vshll.u32 %v573, 30
    %v582 = vshll.u32 %v574, 30
    %v591 = vxor.u32 %v559, %v575
    %v592 = vxor.u32 %v560, %v576
    %v593 = vxor.u32 %v561, %v577
    %v594 = vxor.u32 %v562, %v578
    %v595 = vxor.u32 %v563, %v579
    %v596 = vxor.u32 %v564, %v580
    %v597 = vxor.u32 %v565, %v581
    %v598 = vxor.u32 %v566, %v582
    %607 = vst [vmem:[#allocation7] sm:$0xff] %v591
    %608 = vst [vmem:[#allocation7 + $0x8] sm:$0xff] %v592
    %609 = vst [vmem:[#allocation7 + $0x10] sm:$0xff] %v593
    %610 = vst [vmem:[#allocation7 + $0x18] sm:$0xff] %v594
    %611 = vst [vmem:[#allocation7 + $0x20] sm:$0xff] %v595
    %612 = vst [vmem:[#allocation7 + $0x28] sm:$0xff] %v596
    %613 = vst [vmem:[#allocation7 + $0x30] sm:$0xff] %v597
    %614 = vst [vmem:[#allocation7 + $0x38] sm:$0xff] %v598
    // Predicated region
    $region18: #{tpu_custom_call.1} parent=1 // pred_check
      _
    $region19: #{tpu_custom_call.1} parent=1 // pred_check_branch
      %616 = sbr.rel (0) target = $region21
    $region20: #{tpu_custom_call.1} parent=1 // pred_region
      %s618 = ssub.s32 1024, 1024
      %619 = vsyncadd [#allocation4], %s618
      %s620 = sshll.u32 [#allocation7], 4
      %s621 = int_to_ptr.vmem [resolvable:$true] %s620
      %626 = dma.vmem_to_hbm [thread:$0]  %s621, 1024, %s2, [#allocation4], 512, 512, 32
    $region21: #{tpu_custom_call.1} parent=1 // pred_fallthru
      _
    // Predicated region
    $region22: #{tpu_custom_call.1} parent=1 // pred_check
      _
    $region23: #{tpu_custom_call.1} parent=1 // pred_check_branch
      %628 = sbr.rel (0) target = $region25
    $region24: #{tpu_custom_call.1} parent=1 // pred_region
      %629 = dma.done [#allocation4], 1024
    $region25: #{tpu_custom_call.1} parent=1 // pred_fallthru
      _
    %630 = vsyncpa [#allocation3], 1
    %631 = vsyncpa [#allocation6], 1
    %632 = vsyncpa [#allocation4], 1

</llo_original>
